<compile_context>
chip_gen: v7x
topology: tpu7x:2x2x1
jax: 0.10.0
libtpu: 0.0.40
codegen_flags: <defaults>
</compile_context>

<pallas_src>
import jax
import jax.numpy as jnp
from jax.experimental import pallas as pl
from jax.experimental.pallas import tpu as pltpu


IN_FEATURES = 10
HIDDEN = 64
OUT_FEATURES = 8

_HIGHEST = jax.lax.Precision.HIGHEST


def _round_up(n: int, m: int) -> int:
    return ((n + m - 1) // m) * m


def _cdiv(a: int, b: int) -> int:
    return (a + b - 1) // b


def mlp_kernel(xT_ref, w1_ref, b1_ref, w2_ref, b2_ref, oT_ref):
    # Layer 1: (64,10) @ (10,TM) -> (64,TM), f32 accumulation, full precision.
    h = jnp.dot(w1_ref[...], xT_ref[...],
                preferred_element_type=jnp.float32, precision=_HIGHEST)
    h = jnp.maximum(h + b1_ref[...], 0.0)       # b1 (64,1) broadcasts over lanes
    # Layer 2: (8,64) @ (64,TM) -> (8,TM).
    o = jnp.dot(w2_ref[...], h,
                preferred_element_type=jnp.float32, precision=_HIGHEST)
    oT_ref[...] = (o + b2_ref[...]).astype(oT_ref.dtype)   # b2 (8,1)


def simple_nn_forward(x, w1, b1, w2, b2, *, block_m: int = 8192):
    """x: (B, 10) f32 -> (B, 8) f32.

    w1: (64, 10), b1: (64, 1), w2: (8, 64), b2: (8, 1)  (PyTorch layout).
    """
    B = x.shape[0]

    # Lane-dense layout: batch on the last (lane) axis.
    xT = x.T                                    # (10, B)

    # Batch tile: multiple of 128 (lane granularity), at most block_m, and
    # clamped near ceil(B/4) so the grid has >=4 steps for moderate/large B
    # (lets v7x shard across both TensorCores).  Small B -> single 128 tile.
    TM = max(128, min(_round_up(block_m, 128), _round_up(_cdiv(B, 4), 128)))

    grid = (pl.cdiv(B, TM),)                    # ragged last block is masked

    outT = pl.pallas_call(
        mlp_kernel,
        out_shape=jax.ShapeDtypeStruct((OUT_FEATURES, B), jnp.float32),
        grid_spec=pl.GridSpec(
            grid=grid,
            in_specs=[
                # x^T: tiled over batch on the lane axis.  First dim (10)
                # equals the full array dim; last dim TM is a multiple of 128.
                pl.BlockSpec((IN_FEATURES, TM), lambda i: (0, i)),
                # Weights / biases: full-array blocks with constant index
                # maps -> VMEM-resident across all grid steps.
                pl.BlockSpec((HIDDEN, IN_FEATURES), lambda i: (0, 0)),
                pl.BlockSpec((HIDDEN, 1), lambda i: (0, 0)),
                pl.BlockSpec((OUT_FEATURES, HIDDEN), lambda i: (0, 0)),
                pl.BlockSpec((OUT_FEATURES, 1), lambda i: (0, 0)),
            ],
            # Lane-dense output block (8, TM): unmasked stores.
            out_specs=pl.BlockSpec((OUT_FEATURES, TM), lambda i: (0, i)),
        ),
        compiler_params=pltpu.CompilerParams(
            # Batch axis is embarrassingly parallel (v7x dual-TC sharding).
            dimension_semantics=("parallel",),
            # Explicit VMEM budget: ~448 B/row * TM (x^T + out^T double
            # buffered + h) stays well under 32 MiB for TM <= 32768, which is
            # safe on v5e/v6e (128 MiB) and v7x (64 MiB per TC).
            vmem_limit_bytes=32 * 1024 * 1024,
        ),
    )(xT, w1, b1, w2, b2)

    return outT.T                               # (B, 8)


def init_params(key):
    """PyTorch nn.Linear default init: U(-1/sqrt(fan_in), 1/sqrt(fan_in)).
    Weights in PyTorch (out_features, in_features) layout; biases as
    (out_features, 1) column vectors for the transposed kernel."""
    k1, k2, k3, k4 = jax.random.split(key, 4)
    bound1 = 1.0 / jnp.sqrt(IN_FEATURES)
    bound2 = 1.0 / jnp.sqrt(HIDDEN)
    w1 = jax.random.uniform(k1, (HIDDEN, IN_FEATURES), jnp.float32, -bound1, bound1)
    b1 = jax.random.uniform(k2, (HIDDEN, 1), jnp.float32, -bound1, bound1)
    w2 = jax.random.uniform(k3, (OUT_FEATURES, HIDDEN), jnp.float32, -bound2, bound2)
    b2 = jax.random.uniform(k4, (OUT_FEATURES, 1), jnp.float32, -bound2, bound2)
    return w1, b1, w2, b2


def _reference(x, w1, b1, w2, b2):
    h = jnp.maximum(jnp.dot(x, w1.T, precision=_HIGHEST) + b1[:, 0], 0.0)
    return jnp.dot(h, w2.T, precision=_HIGHEST) + b2[:, 0]


if __name__ == "__main__":
    key = jax.random.PRNGKey(0)
    pkey, xkey, xkey2 = jax.random.split(key, 3)
    params = init_params(pkey)

    # Small primary check: single (ragged) grid step, B < lane tile.
    batch = 8
    x = jax.random.normal(xkey, (batch, IN_FEATURES), jnp.float32)
    out = jax.block_until_ready(simple_nn_forward(x, *params))
    ref = _reference(x, *params)
    assert out.shape == (batch, OUT_FEATURES)
    assert jnp.allclose(out, ref, atol=1e-5, rtol=1e-5)

    # Multi-step grid + ragged last block: 300 rows, 128-wide tiles -> 3 steps.
    batch2 = 300
    x2 = jax.random.normal(xkey2, (batch2, IN_FEATURES), jnp.float32)
    out2 = jax.block_until_ready(simple_nn_forward(x2, *params, block_m=128))
    ref2 = _reference(x2, *params)
    assert out2.shape == (batch2, OUT_FEATURES)
    assert jnp.allclose(out2, ref2, atol=1e-5, rtol=1e-5)

    print("KERNEL_OK")
</pallas_src>

<mosaic_0001>
module attributes {stable_mosaic.version = 11 : i64} {
  func.func @mlp_kernel(%arg0: i32, %arg1: memref<10x128xf32, #tpu.memory_space<vmem>>, %arg2: memref<64x10xf32, #tpu.memory_space<vmem>>, %arg3: memref<64x1xf32, #tpu.memory_space<vmem>>, %arg4: memref<8x64xf32, #tpu.memory_space<vmem>>, %arg5: memref<8x1xf32, #tpu.memory_space<vmem>>, %arg6: memref<8x128xf32, #tpu.memory_space<vmem>>) attributes {dimension_semantics = [#tpu.dimension_semantics<parallel>], iteration_bounds = array<i64: 1>, scalar_prefetch = 0 : i64, scratch_operands = 0 : i64, tpu.core_type = #tpu.core_type<tc>, window_params = [{transform_indices = @transform_0, window_bounds = array<i64: 10, 128>}, {pipeline_mode = #tpu.pipeline_mode<synchronous>, transform_indices = @transform_1, window_bounds = array<i64: 64, 10>}, {pipeline_mode = #tpu.pipeline_mode<synchronous>, transform_indices = @transform_2, window_bounds = array<i64: 64, 1>}, {pipeline_mode = #tpu.pipeline_mode<synchronous>, transform_indices = @transform_3, window_bounds = array<i64: 8, 64>}, {pipeline_mode = #tpu.pipeline_mode<synchronous>, transform_indices = @transform_4, window_bounds = array<i64: 8, 1>}, {transform_indices = @transform_5, window_bounds = array<i64: 8, 128>}]} {
    %c0 = arith.constant 0 : index
    %c0_0 = arith.constant 0 : index
    %0 = vector.load %arg2[%c0, %c0_0] : memref<64x10xf32, #tpu.memory_space<vmem>>, vector<64x10xf32>
    %c0_1 = arith.constant 0 : index
    %c0_2 = arith.constant 0 : index
    %1 = vector.load %arg1[%c0_1, %c0_2] : memref<10x128xf32, #tpu.memory_space<vmem>>, vector<10x128xf32>
    %cst = arith.constant dense<0.000000e+00> : vector<64x128xf32>
    %2 = tpu.matmul %0, %1, %cst {dimension_numbers = #tpu.dot_dimension_numbers<[1], [0], [0], [1], [0, 0, 1, 1], [], []>, precision = #tpu.contract_precision<fp32>} : vector<64x10xf32>, vector<10x128xf32>, vector<64x128xf32> -> vector<64x128xf32>
    %c0_3 = arith.constant 0 : index
    %c0_4 = arith.constant 0 : index
    %3 = vector.load %arg3[%c0_3, %c0_4] : memref<64x1xf32, #tpu.memory_space<vmem>>, vector<64x1xf32>
    %4 = vector.broadcast %3 : vector<64x1xf32> to vector<64x128xf32>
    %5 = arith.addf %2, %4 : vector<64x128xf32>
    %cst_5 = arith.constant 0.000000e+00 : f32
    %6 = vector.broadcast %cst_5 : f32 to vector<64x128xf32>
    %7 = arith.maximumf %5, %6 : vector<64x128xf32>
    %c0_6 = arith.constant 0 : index
    %c0_7 = arith.constant 0 : index
    %8 = vector.load %arg4[%c0_6, %c0_7] : memref<8x64xf32, #tpu.memory_space<vmem>>, vector<8x64xf32>
    %cst_8 = arith.constant dense<0.000000e+00> : vector<8x128xf32>
    %9 = tpu.matmul %8, %7, %cst_8 {dimension_numbers = #tpu.dot_dimension_numbers<[1], [0], [0], [1], [0, 0, 1, 1], [], []>, precision = #tpu.contract_precision<fp32>} : vector<8x64xf32>, vector<64x128xf32>, vector<8x128xf32> -> vector<8x128xf32>
    %c0_9 = arith.constant 0 : index
    %c0_10 = arith.constant 0 : index
    %10 = vector.load %arg5[%c0_9, %c0_10] : memref<8x1xf32, #tpu.memory_space<vmem>>, vector<8x1xf32>
    %11 = vector.broadcast %10 : vector<8x1xf32> to vector<8x128xf32>
    %12 = arith.addf %9, %11 : vector<8x128xf32>
    %c0_11 = arith.constant 0 : index
    %c0_12 = arith.constant 0 : index
    %13 = vector.load %arg6[%c0_11, %c0_12] : memref<8x128xf32, #tpu.memory_space<vmem>>, vector<8x128xf32>
    tpu.vector_store %arg6[%c0_11, %c0_12], %12 {strides = array<i32>} : memref<8x128xf32, #tpu.memory_space<vmem>>, vector<8x128xf32>,
    return
  }
  func.func @transform_0(%arg0: i32) -> (i32, i32) {
    %c0_i32 = arith.constant 0 : i32
    %c0_i32_0 = arith.constant 0 : i32
    return %c0_i32, %arg0 : i32, i32
  }
  func.func @transform_1(%arg0: i32) -> (i32, i32) {
    %c0_i32 = arith.constant 0 : i32
    %c0_i32_0 = arith.constant 0 : i32
    %c0_i32_1 = arith.constant 0 : i32
    return %c0_i32, %c0_i32_0 : i32, i32
  }
  func.func @transform_2(%arg0: i32) -> (i32, i32) {
    %c0_i32 = arith.constant 0 : i32
    %c0_i32_0 = arith.constant 0 : i32
    %c0_i32_1 = arith.constant 0 : i32
    return %c0_i32, %c0_i32_0 : i32, i32
  }
  func.func @transform_3(%arg0: i32) -> (i32, i32) {
    %c0_i32 = arith.constant 0 : i32
    %c0_i32_0 = arith.constant 0 : i32
    %c0_i32_1 = arith.constant 0 : i32
    return %c0_i32, %c0_i32_0 : i32, i32
  }
  func.func @transform_4(%arg0: i32) -> (i32, i32) {
    %c0_i32 = arith.constant 0 : i32
    %c0_i32_0 = arith.constant 0 : i32
    %c0_i32_1 = arith.constant 0 : i32
    return %c0_i32, %c0_i32_0 : i32, i32
  }
  func.func @transform_5(%arg0: i32) -> (i32, i32) {
    %c0_i32 = arith.constant 0 : i32
    %c0_i32_0 = arith.constant 0 : i32
    return %c0_i32, %arg0 : i32, i32
  }
}

</mosaic_0001>

<llo_original>
// kernel: tpu_custom_call.1
$region0: #{tpu_custom_call.1}
  #allocation0 [shape = 'u32[]', space=smem, size = 0x4, offset = 0x4, fixed_abs, tag = 'smem constant byte address 0x4 - core index']
  #allocation1 [shape = 'u32[144,128]{1,0:T(1,128)}', space=vmem, size = 0x12000, scoped, tag = 'internal scratch']
  %s0 = inlined_call_operand.vmem [shape: f32[10,8], index: 0, kind: input, shape index: {}]
  %s1 = inlined_call_operand.vmem [shape: f32[64,10], index: 1, kind: input, shape index: {}]
  %s2 = inlined_call_operand.vmem [shape: f32[64,1], index: 2, kind: input, shape index: {}]
  %s3 = inlined_call_operand.vmem [shape: f32[8,64], index: 3, kind: input, shape index: {}]
  %s4 = inlined_call_operand.vmem [shape: f32[8,1], index: 4, kind: input, shape index: {}]
  %s5 = inlined_call_operand.hbm [shape: f32[8,8], index: 5, kind: output, shape index: {}]
  %s6 = sld [smem:[#allocation0]]
  $region30: #{tpu_custom_call.1} parent=0
    _
  %s8 = ssub.s32 1, %s6
  %s9 = scalar_select 0, %s8, %s6
  $region1: #{tpu_custom_call.1} parent=0
    #allocation2 [shape = 'u8[4096]{0}', space=vmem, size = 0x1000, scoped, tag = 'output window, operand 0, single buffered']
    #allocation3 [shape = 's32[1]{0}', space=sflag, size = 0x4, scoped, tag = 'scoped memory for tpu_custom_call.1']
    %10 = vsyncpa [#allocation3], 0
    // Predicated region
    $region2: #{tpu_custom_call.1} parent=1 // pred_check
      _
    $region3: #{tpu_custom_call.1} parent=1 // pred_check_branch
      %12 = sbr.rel (0) target = $region5
    $region4: #{tpu_custom_call.1} parent=1 // pred_region
      _
    $region5: #{tpu_custom_call.1} parent=1 // pred_fallthru
      _
    // Predicated region
    $region6: #{tpu_custom_call.1} parent=1 // pred_check
      _
    $region7: #{tpu_custom_call.1} parent=1 // pred_check_branch
      %14 = sbr.rel (0) target = $region9
    $region8: #{tpu_custom_call.1} parent=1 // pred_region
      _
    $region9: #{tpu_custom_call.1} parent=1 // pred_fallthru
      _
    // Predicated region
    $region10: #{tpu_custom_call.1} parent=1 // pred_check
      _
    $region11: #{tpu_custom_call.1} parent=1 // pred_check_branch
      %16 = sbr.rel (0) target = $region13
    $region12: #{tpu_custom_call.1} parent=1 // pred_region
      _
    $region13: #{tpu_custom_call.1} parent=1 // pred_fallthru
      _
    // Predicated region
    $region14: #{tpu_custom_call.1} parent=1 // pred_check
      _
    $region15: #{tpu_custom_call.1} parent=1 // pred_check_branch
      %18 = sbr.rel (0) target = $region17
    $region16: #{tpu_custom_call.1} parent=1 // pred_region
      _
    $region17: #{tpu_custom_call.1} parent=1 // pred_fallthru
      _
    // Predicated region
    $region18: #{tpu_custom_call.1} parent=1 // pred_check
      _
    $region19: #{tpu_custom_call.1} parent=1 // pred_check_branch
      %20 = sbr.rel (0) target = $region21
    $region20: #{tpu_custom_call.1} parent=1 // pred_region
      _
    $region21: #{tpu_custom_call.1} parent=1 // pred_fallthru
      _
    %v21 = vld [vmem:[%s1] sm:$0xff]
    %v22 = vld [vmem:[%s1 + $0x8] sm:$0xff]
    %v23 = vld [vmem:[%s1 + $0x10] sm:$0xff]
    %v24 = vld [vmem:[%s1 + $0x18] sm:$0xff]
    %v25 = vld [vmem:[%s1 + $0x20] sm:$0xff]
    %v26 = vld [vmem:[%s1 + $0x28] sm:$0xff]
    %v27 = vld [vmem:[%s1 + $0x30] sm:$0xff]
    %v28 = vld [vmem:[%s1 + $0x38] sm:$0xff]
    %v29 = vld [vmem:[%s0] sm:$0xff]
    %v30 = vld [vmem:[%s0 + $0x8] sm:$0x3]
    %v31 = vld [vmem:[%s2] sm:$0xff]
    %v32 = vld [vmem:[%s2 + $0x8] sm:$0xff]
    %v33 = vld [vmem:[%s2 + $0x10] sm:$0xff]
    %v34 = vld [vmem:[%s2 + $0x18] sm:$0xff]
    %v35 = vld [vmem:[%s2 + $0x20] sm:$0xff]
    %v36 = vld [vmem:[%s2 + $0x28] sm:$0xff]
    %v37 = vld [vmem:[%s2 + $0x30] sm:$0xff]
    %v38 = vld [vmem:[%s2 + $0x38] sm:$0xff]
    %40 = vset.pattern.permute.xlu0 0
    %41 = vperm.xlu0 %40, %v31
    %v42 = vpop.permute.xlu0 %41
    %45 = vset.pattern.permute.xlu0 0
    %46 = vperm.xlu0 %45, %v32
    %v47 = vpop.permute.xlu0 %46
    %50 = vset.pattern.permute.xlu0 0
    %51 = vperm.xlu0 %50, %v33
    %v52 = vpop.permute.xlu0 %51
    %55 = vset.pattern.permute.xlu0 0
    %56 = vperm.xlu0 %55, %v34
    %v57 = vpop.permute.xlu0 %56
    %60 = vset.pattern.permute.xlu0 0
    %61 = vperm.xlu0 %60, %v35
    %v62 = vpop.permute.xlu0 %61
    %65 = vset.pattern.permute.xlu0 0
    %66 = vperm.xlu0 %65, %v36
    %v67 = vpop.permute.xlu0 %66
    %70 = vset.pattern.permute.xlu0 0
    %71 = vperm.xlu0 %70, %v37
    %v72 = vpop.permute.xlu0 %71
    %75 = vset.pattern.permute.xlu0 0
    %76 = vperm.xlu0 %75, %v38
    %v77 = vpop.permute.xlu0 %76
    %vm79 = vcmask 80896
    %v81 = vsel %vm79, %v21, 0
    %v84 = vsel %vm79, %v22, 0
    %v87 = vsel %vm79, %v23, 0
    %v90 = vsel %vm79, %v24, 0
    %v93 = vsel %vm79, %v25, 0
    %v96 = vsel %vm79, %v26, 0
    %v99 = vsel %vm79, %v27, 0
    %v102 = vsel %vm79, %v28, 0
    %vm104 = vcmask 1041408
    %v106 = vsel %vm104, %v30, 0
    %108 = vmatprep.subr.mxu0 0.0
    %v109 = vand.u32 %v29, 4294901760
    %110 = vmatpush1.msra.mxu0 %v109
    %111 = vmatprep.subr.mxu0 0.0
    %v112 = vand.u32 %v106, 4294901760
    %113 = vmatpush1.msra.mxu0 %v112
    %114 = vmatprep.subr.mxu0 0.0
    %115 = vmatpush1.msra.mxu0 0.0
    %116 = vmatprep.subr.mxu0 0.0
    %117 = vmatpush1.msra.mxu0 0.0
    %118 = vmatprep.subr.mxu0 0.0
    %119 = vmatpush1.msra.mxu0 0.0
    %120 = vmatprep.subr.mxu0 0.0
    %121 = vmatpush1.msra.mxu0 0.0
    %122 = vmatprep.subr.mxu0 0.0
    %123 = vmatpush1.msra.mxu0 0.0
    %124 = vmatprep.subr.mxu0 0.0
    %125 = vmatpush1.msra.mxu0 0.0
    %126 = vmatprep.subr.mxu0 0.0
    %127 = vmatpush1.msra.mxu0 0.0
    %128 = vmatprep.subr.mxu0 0.0
    %129 = vmatpush1.msra.mxu0 0.0
    %130 = vmatprep.subr.mxu0 0.0
    %131 = vmatpush1.msra.mxu0 0.0
    %132 = vmatprep.subr.mxu0 0.0
    %133 = vmatpush1.msra.mxu0 0.0
    %134 = vmatprep.subr.mxu0 0.0
    %135 = vmatpush1.msra.mxu0 0.0
    %136 = vmatprep.subr.mxu0 0.0
    %137 = vmatpush1.msra.mxu0 0.0
    %138 = vmatprep.subr.mxu0 0.0
    %139 = vmatpush1.msra.mxu0 0.0
    %140 = vmatprep.subr.mxu0 0.0
    %141 = vmatpush1.msra.mxu0 0.0
    %142 = vmatprep.subr.mxu0 0.0
    %143 = vmatpush1.msra.mxu0 0.0
    %144 = vmatprep.subr.mxu0 0.0
    %145 = vmatpush1.msra.mxu0 0.0
    %146 = vmatprep.subr.mxu0 0.0
    %147 = vmatpush1.msra.mxu0 0.0
    %148 = vmatprep.subr.mxu0 0.0
    %149 = vmatpush1.msra.mxu0 0.0
    %150 = vmatprep.subr.mxu0 0.0
    %151 = vmatpush1.msra.mxu0 0.0
    %152 = vmatprep.subr.mxu0 0.0
    %153 = vmatpush1.msra.mxu0 0.0
    %154 = vmatprep.subr.mxu0 0.0
    %155 = vmatpush1.msra.mxu0 0.0
    %156 = vmatprep.subr.mxu0 0.0
    %157 = vmatpush1.msra.mxu0 0.0
    %158 = vmatprep.subr.mxu0 0.0
    %159 = vmatpush1.msra.mxu0 0.0
    %160 = vmatprep.subr.mxu0 0.0
    %161 = vmatpush1.msra.mxu0 0.0
    %162 = vmatprep.subr.mxu0 0.0
    %163 = vmatpush1.msra.mxu0 0.0
    %164 = vmatprep.subr.mxu0 0.0
    %165 = vmatpush1.msra.mxu0 0.0
    %166 = vmatprep.subr.mxu0 0.0
    %167 = vmatpush1.msra.mxu0 0.0
    %168 = vmatprep.subr.mxu0 0.0
    %169 = vmatpush1.msra.mxu0 0.0
    %170 = vmatprep.subr.mxu0 0.0
    %171 = vmatpush1.msra.mxu0 0.0
    %172 = vmatprep.subr.mxu0 0.0
    %173 = vmatpush1.msra.mxu0 0.0
    %174 = vmatprep.mubr.f32.mxu0 0.0
    %v175 = vand.u32 %v81, 4294901760
    %v176 = vsub.f32 %v81, %v175
    %v177 = vand.u32 %v176, 4294901760
    %v178 = vsub.f32 %v176, %v177
    %v179 = vand.u32 %v178, 4294901760
    %180 = vmatmul.mubr.f32.gmra.mrb[0].mxu0 %v179
    %v181 = vpop.f32.mrb[0].mxu0
    %v182 = vadd.f32 %v42, %v181
    %v183 = vpop.f32.mrb[0].mxu0
    %184 = vmatprep.mubr.f32.mxu0 0.0
    %v185 = vand.u32 %v84, 4294901760
    %v186 = vsub.f32 %v84, %v185
    %v187 = vand.u32 %v186, 4294901760
    %v188 = vsub.f32 %v186, %v187
    %v189 = vand.u32 %v188, 4294901760
    %190 = vmatmul.mubr.f32.gmra.mrb[0].mxu0 %v189
    %v191 = vpop.f32.mrb[0].mxu0
    %v192 = vadd.f32 %v47, %v191
    %v193 = vpop.f32.mrb[0].mxu0
    %194 = vmatprep.mubr.f32.mxu0 0.0
    %v195 = vand.u32 %v87, 4294901760
    %v196 = vsub.f32 %v87, %v195
    %v197 = vand.u32 %v196, 4294901760
    %v198 = vsub.f32 %v196, %v197
    %v199 = vand.u32 %v198, 4294901760
    %200 = vmatmul.mubr.f32.gmra.mrb[0].mxu0 %v199
    %v201 = vpop.f32.mrb[0].mxu0
    %v202 = vadd.f32 %v52, %v201
    %v203 = vpop.f32.mrb[0].mxu0
    %204 = vmatprep.mubr.f32.mxu0 0.0
    %v205 = vand.u32 %v90, 4294901760
    %v206 = vsub.f32 %v90, %v205
    %v207 = vand.u32 %v206, 4294901760
    %v208 = vsub.f32 %v206, %v207
    %v209 = vand.u32 %v208, 4294901760
    %210 = vmatmul.mubr.f32.gmra.mrb[0].mxu0 %v209
    %v211 = vpop.f32.mrb[0].mxu0
    %v212 = vadd.f32 %v57, %v211
    %v213 = vpop.f32.mrb[0].mxu0
    %214 = vmatprep.mubr.f32.mxu0 0.0
    %v215 = vand.u32 %v93, 4294901760
    %v216 = vsub.f32 %v93, %v215
    %v217 = vand.u32 %v216, 4294901760
    %v218 = vsub.f32 %v216, %v217
    %v219 = vand.u32 %v218, 4294901760
    %220 = vmatmul.mubr.f32.gmra.mrb[0].mxu0 %v219
    %v221 = vpop.f32.mrb[0].mxu0
    %v222 = vadd.f32 %v62, %v221
    %v223 = vpop.f32.mrb[0].mxu0
    %224 = vmatprep.mubr.f32.mxu0 0.0
    %v225 = vand.u32 %v96, 4294901760
    %v226 = vsub.f32 %v96, %v225
    %v227 = vand.u32 %v226, 4294901760
    %v228 = vsub.f32 %v226, %v227
    %v229 = vand.u32 %v228, 4294901760
    %230 = vmatmul.mubr.f32.gmra.mrb[0].mxu0 %v229
    %v231 = vpop.f32.mrb[0].mxu0
    %v232 = vadd.f32 %v67, %v231
    %v233 = vpop.f32.mrb[0].mxu0
    %234 = vmatprep.mubr.f32.mxu0 0.0
    %v235 = vand.u32 %v99, 4294901760
    %v236 = vsub.f32 %v99, %v235
    %v237 = vand.u32 %v236, 4294901760
    %v238 = vsub.f32 %v236, %v237
    %v239 = vand.u32 %v238, 4294901760
    %240 = vmatmul.mubr.f32.gmra.mrb[0].mxu0 %v239
    %v241 = vpop.f32.mrb[0].mxu0
    %v242 = vadd.f32 %v72, %v241
    %v243 = vpop.f32.mrb[0].mxu0
    %244 = vmatprep.mubr.f32.mxu0 0.0
    %v245 = vand.u32 %v102, 4294901760
    %v246 = vsub.f32 %v102, %v245
    %v247 = vand.u32 %v246, 4294901760
    %v248 = vsub.f32 %v246, %v247
    %v249 = vand.u32 %v248, 4294901760
    %250 = vmatmul.mubr.f32.gmra.mrb[0].mxu0 %v249
    %v251 = vpop.f32.mrb[0].mxu0
    %v252 = vadd.f32 %v77, %v251
    %v253 = vpop.f32.mrb[0].mxu0
    %254 = vdwg.mxu0
    %255 = vmatprep.subr.mxu0 0.0
    %v256 = vand.u32 %v29, 4294901760
    %v257 = vsub.f32 %v29, %v256
    %v258 = vand.u32 %v257, 4294901760
    %v259 = vsub.f32 %v257, %v258
    %v260 = vand.u32 %v259, 4294901760
    %261 = vmatpush1.msra.mxu0 %v260
    %262 = vmatprep.subr.mxu0 0.0
    %v263 = vand.u32 %v106, 4294901760
    %v264 = vsub.f32 %v106, %v263
    %v265 = vand.u32 %v264, 4294901760
    %v266 = vsub.f32 %v264, %v265
    %v267 = vand.u32 %v266, 4294901760
    %268 = vmatpush1.msra.mxu0 %v267
    %269 = vmatprep.subr.mxu0 0.0
    %270 = vmatpush1.msra.mxu0 0.0
    %271 = vmatprep.subr.mxu0 0.0
    %272 = vmatpush1.msra.mxu0 0.0
    %273 = vmatprep.subr.mxu0 0.0
    %274 = vmatpush1.msra.mxu0 0.0
    %275 = vmatprep.subr.mxu0 0.0
    %276 = vmatpush1.msra.mxu0 0.0
    %277 = vmatprep.subr.mxu0 0.0
    %278 = vmatpush1.msra.mxu0 0.0
    %279 = vmatprep.subr.mxu0 0.0
    %280 = vmatpush1.msra.mxu0 0.0
    %281 = vmatprep.subr.mxu0 0.0
    %282 = vmatpush1.msra.mxu0 0.0
    %283 = vmatprep.subr.mxu0 0.0
    %284 = vmatpush1.msra.mxu0 0.0
    %285 = vmatprep.subr.mxu0 0.0
    %286 = vmatpush1.msra.mxu0 0.0
    %287 = vmatprep.subr.mxu0 0.0
    %288 = vmatpush1.msra.mxu0 0.0
    %289 = vmatprep.subr.mxu0 0.0
    %290 = vmatpush1.msra.mxu0 0.0
    %291 = vmatprep.subr.mxu0 0.0
    %292 = vmatpush1.msra.mxu0 0.0
    %293 = vmatprep.subr.mxu0 0.0
    %294 = vmatpush1.msra.mxu0 0.0
    %295 = vmatprep.subr.mxu0 0.0
    %296 = vmatpush1.msra.mxu0 0.0
    %297 = vmatprep.subr.mxu0 0.0
    %298 = vmatpush1.msra.mxu0 0.0
    %299 = vmatprep.subr.mxu0 0.0
    %300 = vmatpush1.msra.mxu0 0.0
    %301 = vmatprep.subr.mxu0 0.0
    %302 = vmatpush1.msra.mxu0 0.0
    %303 = vmatprep.subr.mxu0 0.0
    %304 = vmatpush1.msra.mxu0 0.0
    %305 = vmatprep.subr.mxu0 0.0
    %306 = vmatpush1.msra.mxu0 0.0
    %307 = vmatprep.subr.mxu0 0.0
    %308 = vmatpush1.msra.mxu0 0.0
    %309 = vmatprep.subr.mxu0 0.0
    %310 = vmatpush1.msra.mxu0 0.0
    %311 = vmatprep.subr.mxu0 0.0
    %312 = vmatpush1.msra.mxu0 0.0
    %313 = vmatprep.subr.mxu0 0.0
    %314 = vmatpush1.msra.mxu0 0.0
    %315 = vmatprep.subr.mxu0 0.0
    %316 = vmatpush1.msra.mxu0 0.0
    %317 = vmatprep.subr.mxu0 0.0
    %318 = vmatpush1.msra.mxu0 0.0
    %319 = vmatprep.subr.mxu0 0.0
    %320 = vmatpush1.msra.mxu0 0.0
    %321 = vmatprep.subr.mxu0 0.0
    %322 = vmatpush1.msra.mxu0 0.0
    %323 = vmatprep.subr.mxu0 0.0
    %324 = vmatpush1.msra.mxu0 0.0
    %325 = vmatprep.subr.mxu0 0.0
    %326 = vmatpush1.msra.mxu0 0.0
    %327 = vmatprep.subr.mxu0 0.0
    %328 = vmatpush1.msra.mxu0 0.0
    %329 = vmatprep.mubr.f32.mxu0 0.0
    %v330 = vand.u32 %v81, 4294901760
    %331 = vmatmul.mubr.f32.gmra.mrb[0].mxu0 %v330
    %v332 = vpop.f32.mrb[0].mxu0
    %v333 = vadd.f32 %v182, %v332
    %v334 = vpop.f32.mrb[0].mxu0
    %335 = vmatprep.mubr.f32.mxu0 0.0
    %v336 = vand.u32 %v84, 4294901760
    %337 = vmatmul.mubr.f32.gmra.mrb[0].mxu0 %v336
    %v338 = vpop.f32.mrb[0].mxu0
    %v339 = vadd.f32 %v192, %v338
    %v340 = vpop.f32.mrb[0].mxu0
    %341 = vmatprep.mubr.f32.mxu0 0.0
    %v342 = vand.u32 %v87, 4294901760
    %343 = vmatmul.mubr.f32.gmra.mrb[0].mxu0 %v342
    %v344 = vpop.f32.mrb[0].mxu0
    %v345 = vadd.f32 %v202, %v344
    %v346 = vpop.f32.mrb[0].mxu0
    %347 = vmatprep.mubr.f32.mxu0 0.0
    %v348 = vand.u32 %v90, 4294901760
    %349 = vmatmul.mubr.f32.gmra.mrb[0].mxu0 %v348
    %v350 = vpop.f32.mrb[0].mxu0
    %v351 = vadd.f32 %v212, %v350
    %v352 = vpop.f32.mrb[0].mxu0
    %353 = vmatprep.mubr.f32.mxu0 0.0
    %v354 = vand.u32 %v93, 4294901760
    %355 = vmatmul.mubr.f32.gmra.mrb[0].mxu0 %v354
    %v356 = vpop.f32.mrb[0].mxu0
    %v357 = vadd.f32 %v222, %v356
    %v358 = vpop.f32.mrb[0].mxu0
    %359 = vmatprep.mubr.f32.mxu0 0.0
    %v360 = vand.u32 %v96, 4294901760
    %361 = vmatmul.mubr.f32.gmra.mrb[0].mxu0 %v360
    %v362 = vpop.f32.mrb[0].mxu0
    %v363 = vadd.f32 %v232, %v362
    %v364 = vpop.f32.mrb[0].mxu0
    %365 = vmatprep.mubr.f32.mxu0 0.0
    %v366 = vand.u32 %v99, 4294901760
    %367 = vmatmul.mubr.f32.gmra.mrb[0].mxu0 %v366
    %v368 = vpop.f32.mrb[0].mxu0
    %v369 = vadd.f32 %v242, %v368
    %v370 = vpop.f32.mrb[0].mxu0
    %371 = vmatprep.mubr.f32.mxu0 0.0
    %v372 = vand.u32 %v102, 4294901760
    %373 = vmatmul.mubr.f32.gmra.mrb[0].mxu0 %v372
    %v374 = vpop.f32.mrb[0].mxu0
    %v375 = vadd.f32 %v252, %v374
    %v376 = vpop.f32.mrb[0].mxu0
    %377 = vdwg.mxu0
    %378 = vmatprep.subr.mxu0 0.0
    %v379 = vand.u32 %v29, 4294901760
    %v380 = vsub.f32 %v29, %v379
    %381 = vmatpush1.msra.mxu0 %v380
    %382 = vmatprep.subr.mxu0 0.0
    %v383 = vand.u32 %v106, 4294901760
    %v384 = vsub.f32 %v106, %v383
    %385 = vmatpush1.msra.mxu0 %v384
    %386 = vmatprep.subr.mxu0 0.0
    %387 = vmatpush1.msra.mxu0 0.0
    %388 = vmatprep.subr.mxu0 0.0
    %389 = vmatpush1.msra.mxu0 0.0
    %390 = vmatprep.subr.mxu0 0.0
    %391 = vmatpush1.msra.mxu0 0.0
    %392 = vmatprep.subr.mxu0 0.0
    %393 = vmatpush1.msra.mxu0 0.0
    %394 = vmatprep.subr.mxu0 0.0
    %395 = vmatpush1.msra.mxu0 0.0
    %396 = vmatprep.subr.mxu0 0.0
    %397 = vmatpush1.msra.mxu0 0.0
    %398 = vmatprep.subr.mxu0 0.0
    %399 = vmatpush1.msra.mxu0 0.0
    %400 = vmatprep.subr.mxu0 0.0
    %401 = vmatpush1.msra.mxu0 0.0
    %402 = vmatprep.subr.mxu0 0.0
    %403 = vmatpush1.msra.mxu0 0.0
    %404 = vmatprep.subr.mxu0 0.0
    %405 = vmatpush1.msra.mxu0 0.0
    %406 = vmatprep.subr.mxu0 0.0
    %407 = vmatpush1.msra.mxu0 0.0
    %408 = vmatprep.subr.mxu0 0.0
    %409 = vmatpush1.msra.mxu0 0.0
    %410 = vmatprep.subr.mxu0 0.0
    %411 = vmatpush1.msra.mxu0 0.0
    %412 = vmatprep.subr.mxu0 0.0
    %413 = vmatpush1.msra.mxu0 0.0
    %414 = vmatprep.subr.mxu0 0.0
    %415 = vmatpush1.msra.mxu0 0.0
    %416 = vmatprep.subr.mxu0 0.0
    %417 = vmatpush1.msra.mxu0 0.0
    %418 = vmatprep.subr.mxu0 0.0
    %419 = vmatpush1.msra.mxu0 0.0
    %420 = vmatprep.subr.mxu0 0.0
    %421 = vmatpush1.msra.mxu0 0.0
    %422 = vmatprep.subr.mxu0 0.0
    %423 = vmatpush1.msra.mxu0 0.0
    %424 = vmatprep.subr.mxu0 0.0
    %425 = vmatpush1.msra.mxu0 0.0
    %426 = vmatprep.subr.mxu0 0.0
    %427 = vmatpush1.msra.mxu0 0.0
    %428 = vmatprep.subr.mxu0 0.0
    %429 = vmatpush1.msra.mxu0 0.0
    %430 = vmatprep.subr.mxu0 0.0
    %431 = vmatpush1.msra.mxu0 0.0
    %432 = vmatprep.subr.mxu0 0.0
    %433 = vmatpush1.msra.mxu0 0.0
    %434 = vmatprep.subr.mxu0 0.0
    %435 = vmatpush1.msra.mxu0 0.0
    %436 = vmatprep.subr.mxu0 0.0
    %437 = vmatpush1.msra.mxu0 0.0
    %438 = vmatprep.subr.mxu0 0.0
    %439 = vmatpush1.msra.mxu0 0.0
    %440 = vmatprep.subr.mxu0 0.0
    %441 = vmatpush1.msra.mxu0 0.0
    %442 = vmatprep.subr.mxu0 0.0
    %443 = vmatpush1.msra.mxu0 0.0
    %444 = vmatprep.subr.mxu0 0.0
    %445 = vmatpush1.msra.mxu0 0.0
    %446 = vmatprep.mubr.f32.mxu0 0.0
    %v447 = vand.u32 %v81, 4294901760
    %v448 = vsub.f32 %v81, %v447
    %449 = vmatmul.mubr.f32.gmra.mrb[0].mxu0 %v448
    %v450 = vpop.f32.mrb[0].mxu0
    %v451 = vadd.f32 %v333, %v450
    %v452 = vpop.f32.mrb[0].mxu0
    %453 = vmatprep.mubr.f32.mxu0 0.0
    %v454 = vand.u32 %v84, 4294901760
    %v455 = vsub.f32 %v84, %v454
    %456 = vmatmul.mubr.f32.gmra.mrb[0].mxu0 %v455
    %v457 = vpop.f32.mrb[0].mxu0
    %v458 = vadd.f32 %v339, %v457
    %v459 = vpop.f32.mrb[0].mxu0
    %460 = vmatprep.mubr.f32.mxu0 0.0
    %v461 = vand.u32 %v87, 4294901760
    %v462 = vsub.f32 %v87, %v461
    %463 = vmatmul.mubr.f32.gmra.mrb[0].mxu0 %v462
    %v464 = vpop.f32.mrb[0].mxu0
    %v465 = vadd.f32 %v345, %v464
    %v466 = vpop.f32.mrb[0].mxu0
    %467 = vmatprep.mubr.f32.mxu0 0.0
    %v468 = vand.u32 %v90, 4294901760
    %v469 = vsub.f32 %v90, %v468
    %470 = vmatmul.mubr.f32.gmra.mrb[0].mxu0 %v469
    %v471 = vpop.f32.mrb[0].mxu0
    %v472 = vadd.f32 %v351, %v471
    %v473 = vpop.f32.mrb[0].mxu0
    %474 = vmatprep.mubr.f32.mxu0 0.0
    %v475 = vand.u32 %v93, 4294901760
    %v476 = vsub.f32 %v93, %v475
    %477 = vmatmul.mubr.f32.gmra.mrb[0].mxu0 %v476
    %v478 = vpop.f32.mrb[0].mxu0
    %v479 = vadd.f32 %v357, %v478
    %v480 = vpop.f32.mrb[0].mxu0
    %481 = vmatprep.mubr.f32.mxu0 0.0
    %v482 = vand.u32 %v96, 4294901760
    %v483 = vsub.f32 %v96, %v482
    %484 = vmatmul.mubr.f32.gmra.mrb[0].mxu0 %v483
    %v485 = vpop.f32.mrb[0].mxu0
    %v486 = vadd.f32 %v363, %v485
    %v487 = vpop.f32.mrb[0].mxu0
    %488 = vmatprep.mubr.f32.mxu0 0.0
    %v489 = vand.u32 %v99, 4294901760
    %v490 = vsub.f32 %v99, %v489
    %491 = vmatmul.mubr.f32.gmra.mrb[0].mxu0 %v490
    %v492 = vpop.f32.mrb[0].mxu0
    %v493 = vadd.f32 %v369, %v492
    %v494 = vpop.f32.mrb[0].mxu0
    %495 = vmatprep.mubr.f32.mxu0 0.0
    %v496 = vand.u32 %v102, 4294901760
    %v497 = vsub.f32 %v102, %v496
    %498 = vmatmul.mubr.f32.gmra.mrb[0].mxu0 %v497
    %v499 = vpop.f32.mrb[0].mxu0
    %v500 = vadd.f32 %v375, %v499
    %v501 = vpop.f32.mrb[0].mxu0
    %502 = vdwg.mxu0
    %503 = vmatprep.subr.mxu0 0.0
    %v504 = vand.u32 %v29, 4294901760
    %505 = vmatpush1.msra.mxu0 %v504
    %506 = vmatprep.subr.mxu0 0.0
    %v507 = vand.u32 %v106, 4294901760
    %508 = vmatpush1.msra.mxu0 %v507
    %509 = vmatprep.subr.mxu0 0.0
    %510 = vmatpush1.msra.mxu0 0.0
    %511 = vmatprep.subr.mxu0 0.0
    %512 = vmatpush1.msra.mxu0 0.0
    %513 = vmatprep.subr.mxu0 0.0
    %514 = vmatpush1.msra.mxu0 0.0
    %515 = vmatprep.subr.mxu0 0.0
    %516 = vmatpush1.msra.mxu0 0.0
    %517 = vmatprep.subr.mxu0 0.0
    %518 = vmatpush1.msra.mxu0 0.0
    %519 = vmatprep.subr.mxu0 0.0
    %520 = vmatpush1.msra.mxu0 0.0
    %521 = vmatprep.subr.mxu0 0.0
    %522 = vmatpush1.msra.mxu0 0.0
    %523 = vmatprep.subr.mxu0 0.0
    %524 = vmatpush1.msra.mxu0 0.0
    %525 = vmatprep.subr.mxu0 0.0
    %526 = vmatpush1.msra.mxu0 0.0
    %527 = vmatprep.subr.mxu0 0.0
    %528 = vmatpush1.msra.mxu0 0.0
    %529 = vmatprep.subr.mxu0 0.0
    %530 = vmatpush1.msra.mxu0 0.0
    %531 = vmatprep.subr.mxu0 0.0
    %532 = vmatpush1.msra.mxu0 0.0
    %533 = vmatprep.subr.mxu0 0.0
    %534 = vmatpush1.msra.mxu0 0.0
    %535 = vmatprep.subr.mxu0 0.0
    %536 = vmatpush1.msra.mxu0 0.0
    %537 = vmatprep.subr.mxu0 0.0
    %538 = vmatpush1.msra.mxu0 0.0
    %539 = vmatprep.subr.mxu0 0.0
    %540 = vmatpush1.msra.mxu0 0.0
    %541 = vmatprep.subr.mxu0 0.0
    %542 = vmatpush1.msra.mxu0 0.0
    %543 = vmatprep.subr.mxu0 0.0
    %544 = vmatpush1.msra.mxu0 0.0
    %545 = vmatprep.subr.mxu0 0.0
    %546 = vmatpush1.msra.mxu0 0.0
    %547 = vmatprep.subr.mxu0 0.0
    %548 = vmatpush1.msra.mxu0 0.0
    %549 = vmatprep.subr.mxu0 0.0
    %550 = vmatpush1.msra.mxu0 0.0
    %551 = vmatprep.subr.mxu0 0.0
    %552 = vmatpush1.msra.mxu0 0.0
    %553 = vmatprep.subr.mxu0 0.0
    %554 = vmatpush1.msra.mxu0 0.0
    %555 = vmatprep.subr.mxu0 0.0
    %556 = vmatpush1.msra.mxu0 0.0
    %557 = vmatprep.subr.mxu0 0.0
    %558 = vmatpush1.msra.mxu0 0.0
    %559 = vmatprep.subr.mxu0 0.0
    %560 = vmatpush1.msra.mxu0 0.0
    %561 = vmatprep.subr.mxu0 0.0
    %562 = vmatpush1.msra.mxu0 0.0
    %563 = vmatprep.subr.mxu0 0.0
    %564 = vmatpush1.msra.mxu0 0.0
    %565 = vmatprep.subr.mxu0 0.0
    %566 = vmatpush1.msra.mxu0 0.0
    %567 = vmatprep.subr.mxu0 0.0
    %568 = vmatpush1.msra.mxu0 0.0
    %569 = vmatprep.mubr.f32.mxu0 0.0
    %v570 = vand.u32 %v81, 4294901760
    %v571 = vsub.f32 %v81, %v570
    %v572 = vand.u32 %v571, 4294901760
    %573 = vmatmul.mubr.f32.gmra.mrb[0].mxu0 %v572
    %v574 = vpop.f32.mrb[0].mxu0
    %v575 = vadd.f32 %v451, %v574
    %v576 = vpop.f32.mrb[0].mxu0
    %577 = vmatprep.mubr.f32.mxu0 0.0
    %v578 = vand.u32 %v84, 4294901760
    %v579 = vsub.f32 %v84, %v578
    %v580 = vand.u32 %v579, 4294901760
    %581 = vmatmul.mubr.f32.gmra.mrb[0].mxu0 %v580
    %v582 = vpop.f32.mrb[0].mxu0
    %v583 = vadd.f32 %v458, %v582
    %v584 = vpop.f32.mrb[0].mxu0
    %585 = vmatprep.mubr.f32.mxu0 0.0
    %v586 = vand.u32 %v87, 4294901760
    %v587 = vsub.f32 %v87, %v586
    %v588 = vand.u32 %v587, 4294901760
    %589 = vmatmul.mubr.f32.gmra.mrb[0].mxu0 %v588
    %v590 = vpop.f32.mrb[0].mxu0
    %v591 = vadd.f32 %v465, %v590
    %v592 = vpop.f32.mrb[0].mxu0
    %593 = vmatprep.mubr.f32.mxu0 0.0
    %v594 = vand.u32 %v90, 4294901760
    %v595 = vsub.f32 %v90, %v594
    %v596 = vand.u32 %v595, 4294901760
    %597 = vmatmul.mubr.f32.gmra.mrb[0].mxu0 %v596
    %v598 = vpop.f32.mrb[0].mxu0
    %v599 = vadd.f32 %v472, %v598
    %v600 = vpop.f32.mrb[0].mxu0
    %601 = vmatprep.mubr.f32.mxu0 0.0
    %v602 = vand.u32 %v93, 4294901760
    %v603 = vsub.f32 %v93, %v602
    %v604 = vand.u32 %v603, 4294901760
    %605 = vmatmul.mubr.f32.gmra.mrb[0].mxu0 %v604
    %v606 = vpop.f32.mrb[0].mxu0
    %v607 = vadd.f32 %v479, %v606
    %v608 = vpop.f32.mrb[0].mxu0
    %609 = vmatprep.mubr.f32.mxu0 0.0
    %v610 = vand.u32 %v96, 4294901760
    %v611 = vsub.f32 %v96, %v610
    %v612 = vand.u32 %v611, 4294901760
    %613 = vmatmul.mubr.f32.gmra.mrb[0].mxu0 %v612
    %v614 = vpop.f32.mrb[0].mxu0
    %v615 = vadd.f32 %v486, %v614
    %v616 = vpop.f32.mrb[0].mxu0
    %617 = vmatprep.mubr.f32.mxu0 0.0
    %v618 = vand.u32 %v99, 4294901760
    %v619 = vsub.f32 %v99, %v618
    %v620 = vand.u32 %v619, 4294901760
    %621 = vmatmul.mubr.f32.gmra.mrb[0].mxu0 %v620
    %v622 = vpop.f32.mrb[0].mxu0
    %v623 = vadd.f32 %v493, %v622
    %v624 = vpop.f32.mrb[0].mxu0
    %625 = vmatprep.mubr.f32.mxu0 0.0
    %v626 = vand.u32 %v102, 4294901760
    %v627 = vsub.f32 %v102, %v626
    %v628 = vand.u32 %v627, 4294901760
    %629 = vmatmul.mubr.f32.gmra.mrb[0].mxu0 %v628
    %v630 = vpop.f32.mrb[0].mxu0
    %v631 = vadd.f32 %v500, %v630
    %v632 = vpop.f32.mrb[0].mxu0
    %633 = vdwg.mxu0
    %634 = vmatprep.subr.mxu0 0.0
    %v635 = vand.u32 %v29, 4294901760
    %v636 = vsub.f32 %v29, %v635
    %v637 = vand.u32 %v636, 4294901760
    %638 = vmatpush1.msra.mxu0 %v637
    %639 = vmatprep.subr.mxu0 0.0
    %v640 = vand.u32 %v106, 4294901760
    %v641 = vsub.f32 %v106, %v640
    %v642 = vand.u32 %v641, 4294901760
    %643 = vmatpush1.msra.mxu0 %v642
    %644 = vmatprep.subr.mxu0 0.0
    %645 = vmatpush1.msra.mxu0 0.0
    %646 = vmatprep.subr.mxu0 0.0
    %647 = vmatpush1.msra.mxu0 0.0
    %648 = vmatprep.subr.mxu0 0.0
    %649 = vmatpush1.msra.mxu0 0.0
    %650 = vmatprep.subr.mxu0 0.0
    %651 = vmatpush1.msra.mxu0 0.0
    %652 = vmatprep.subr.mxu0 0.0
    %653 = vmatpush1.msra.mxu0 0.0
    %654 = vmatprep.subr.mxu0 0.0
    %655 = vmatpush1.msra.mxu0 0.0
    %656 = vmatprep.subr.mxu0 0.0
    %657 = vmatpush1.msra.mxu0 0.0
    %658 = vmatprep.subr.mxu0 0.0
    %659 = vmatpush1.msra.mxu0 0.0
    %660 = vmatprep.subr.mxu0 0.0
    %661 = vmatpush1.msra.mxu0 0.0
    %662 = vmatprep.subr.mxu0 0.0
    %663 = vmatpush1.msra.mxu0 0.0
    %664 = vmatprep.subr.mxu0 0.0
    %665 = vmatpush1.msra.mxu0 0.0
    %666 = vmatprep.subr.mxu0 0.0
    %667 = vmatpush1.msra.mxu0 0.0
    %668 = vmatprep.subr.mxu0 0.0
    %669 = vmatpush1.msra.mxu0 0.0
    %670 = vmatprep.subr.mxu0 0.0
    %671 = vmatpush1.msra.mxu0 0.0
    %672 = vmatprep.subr.mxu0 0.0
    %673 = vmatpush1.msra.mxu0 0.0
    %674 = vmatprep.subr.mxu0 0.0
    %675 = vmatpush1.msra.mxu0 0.0
    %676 = vmatprep.subr.mxu0 0.0
    %677 = vmatpush1.msra.mxu0 0.0
    %678 = vmatprep.subr.mxu0 0.0
    %679 = vmatpush1.msra.mxu0 0.0
    %680 = vmatprep.subr.mxu0 0.0
    %681 = vmatpush1.msra.mxu0 0.0
    %682 = vmatprep.subr.mxu0 0.0
    %683 = vmatpush1.msra.mxu0 0.0
    %684 = vmatprep.subr.mxu0 0.0
    %685 = vmatpush1.msra.mxu0 0.0
    %686 = vmatprep.subr.mxu0 0.0
    %687 = vmatpush1.msra.mxu0 0.0
    %688 = vmatprep.subr.mxu0 0.0
    %689 = vmatpush1.msra.mxu0 0.0
    %690 = vmatprep.subr.mxu0 0.0
    %691 = vmatpush1.msra.mxu0 0.0
    %692 = vmatprep.subr.mxu0 0.0
    %693 = vmatpush1.msra.mxu0 0.0
    %694 = vmatprep.subr.mxu0 0.0
    %695 = vmatpush1.msra.mxu0 0.0
    %696 = vmatprep.subr.mxu0 0.0
    %697 = vmatpush1.msra.mxu0 0.0
    %698 = vmatprep.subr.mxu0 0.0
    %699 = vmatpush1.msra.mxu0 0.0
    %700 = vmatprep.subr.mxu0 0.0
    %701 = vmatpush1.msra.mxu0 0.0
    %702 = vmatprep.subr.mxu0 0.0
    %703 = vmatpush1.msra.mxu0 0.0
    %704 = vmatprep.mubr.f32.mxu0 0.0
    %v705 = vand.u32 %v81, 4294901760
    %706 = vmatmul.mubr.f32.gmra.mrb[0].mxu0 %v705
    %v707 = vpop.f32.mrb[0].mxu0
    %v708 = vadd.f32 %v575, %v707
    %v709 = vpop.f32.mrb[0].mxu0
    %710 = vmatprep.mubr.f32.mxu0 0.0
    %v711 = vand.u32 %v84, 4294901760
    %712 = vmatmul.mubr.f32.gmra.mrb[0].mxu0 %v711
    %v713 = vpop.f32.mrb[0].mxu0
    %v714 = vadd.f32 %v583, %v713
    %v715 = vpop.f32.mrb[0].mxu0
    %716 = vmatprep.mubr.f32.mxu0 0.0
    %v717 = vand.u32 %v87, 4294901760
    %718 = vmatmul.mubr.f32.gmra.mrb[0].mxu0 %v717
    %v719 = vpop.f32.mrb[0].mxu0
    %v720 = vadd.f32 %v591, %v719
    %v721 = vpop.f32.mrb[0].mxu0
    %722 = vmatprep.mubr.f32.mxu0 0.0
    %v723 = vand.u32 %v90, 4294901760
    %724 = vmatmul.mubr.f32.gmra.mrb[0].mxu0 %v723
    %v725 = vpop.f32.mrb[0].mxu0
    %v726 = vadd.f32 %v599, %v725
    %v727 = vpop.f32.mrb[0].mxu0
    %728 = vmatprep.mubr.f32.mxu0 0.0
    %v729 = vand.u32 %v93, 4294901760
    %730 = vmatmul.mubr.f32.gmra.mrb[0].mxu0 %v729
    %v731 = vpop.f32.mrb[0].mxu0
    %v732 = vadd.f32 %v607, %v731
    %v733 = vpop.f32.mrb[0].mxu0
    %734 = vmatprep.mubr.f32.mxu0 0.0
    %v735 = vand.u32 %v96, 4294901760
    %736 = vmatmul.mubr.f32.gmra.mrb[0].mxu0 %v735
    %v737 = vpop.f32.mrb[0].mxu0
    %v738 = vadd.f32 %v615, %v737
    %v739 = vpop.f32.mrb[0].mxu0
    %740 = vmatprep.mubr.f32.mxu0 0.0
    %v741 = vand.u32 %v99, 4294901760
    %742 = vmatmul.mubr.f32.gmra.mrb[0].mxu0 %v741
    %v743 = vpop.f32.mrb[0].mxu0
    %v744 = vadd.f32 %v623, %v743
    %v745 = vpop.f32.mrb[0].mxu0
    %746 = vmatprep.mubr.f32.mxu0 0.0
    %v747 = vand.u32 %v102, 4294901760
    %748 = vmatmul.mubr.f32.gmra.mrb[0].mxu0 %v747
    %v749 = vpop.f32.mrb[0].mxu0
    %v750 = vadd.f32 %v631, %v749
    %v751 = vpop.f32.mrb[0].mxu0
    %752 = vdwg.mxu0
    %753 = vmatprep.subr.mxu0 0.0
    %v754 = vand.u32 %v29, 4294901760
    %755 = vmatpush1.msra.mxu0 %v754
    %756 = vmatprep.subr.mxu0 0.0
    %v757 = vand.u32 %v106, 4294901760
    %758 = vmatpush1.msra.mxu0 %v757
    %759 = vmatprep.subr.mxu0 0.0
    %760 = vmatpush1.msra.mxu0 0.0
    %761 = vmatprep.subr.mxu0 0.0
    %762 = vmatpush1.msra.mxu0 0.0
    %763 = vmatprep.subr.mxu0 0.0
    %764 = vmatpush1.msra.mxu0 0.0
    %765 = vmatprep.subr.mxu0 0.0
    %766 = vmatpush1.msra.mxu0 0.0
    %767 = vmatprep.subr.mxu0 0.0
    %768 = vmatpush1.msra.mxu0 0.0
    %769 = vmatprep.subr.mxu0 0.0
    %770 = vmatpush1.msra.mxu0 0.0
    %771 = vmatprep.subr.mxu0 0.0
    %772 = vmatpush1.msra.mxu0 0.0
    %773 = vmatprep.subr.mxu0 0.0
    %774 = vmatpush1.msra.mxu0 0.0
    %775 = vmatprep.subr.mxu0 0.0
    %776 = vmatpush1.msra.mxu0 0.0
    %777 = vmatprep.subr.mxu0 0.0
    %778 = vmatpush1.msra.mxu0 0.0
    %779 = vmatprep.subr.mxu0 0.0
    %780 = vmatpush1.msra.mxu0 0.0
    %781 = vmatprep.subr.mxu0 0.0
    %782 = vmatpush1.msra.mxu0 0.0
    %783 = vmatprep.subr.mxu0 0.0
    %784 = vmatpush1.msra.mxu0 0.0
    %785 = vmatprep.subr.mxu0 0.0
    %786 = vmatpush1.msra.mxu0 0.0
    %787 = vmatprep.subr.mxu0 0.0
    %788 = vmatpush1.msra.mxu0 0.0
    %789 = vmatprep.subr.mxu0 0.0
    %790 = vmatpush1.msra.mxu0 0.0
    %791 = vmatprep.subr.mxu0 0.0
    %792 = vmatpush1.msra.mxu0 0.0
    %793 = vmatprep.subr.mxu0 0.0
    %794 = vmatpush1.msra.mxu0 0.0
    %795 = vmatprep.subr.mxu0 0.0
    %796 = vmatpush1.msra.mxu0 0.0
    %797 = vmatprep.subr.mxu0 0.0
    %798 = vmatpush1.msra.mxu0 0.0
    %799 = vmatprep.subr.mxu0 0.0
    %800 = vmatpush1.msra.mxu0 0.0
    %801 = vmatprep.subr.mxu0 0.0
    %802 = vmatpush1.msra.mxu0 0.0
    %803 = vmatprep.subr.mxu0 0.0
    %804 = vmatpush1.msra.mxu0 0.0
    %805 = vmatprep.subr.mxu0 0.0
    %806 = vmatpush1.msra.mxu0 0.0
    %807 = vmatprep.subr.mxu0 0.0
    %808 = vmatpush1.msra.mxu0 0.0
    %809 = vmatprep.subr.mxu0 0.0
    %810 = vmatpush1.msra.mxu0 0.0
    %811 = vmatprep.subr.mxu0 0.0
    %812 = vmatpush1.msra.mxu0 0.0
    %813 = vmatprep.subr.mxu0 0.0
    %814 = vmatpush1.msra.mxu0 0.0
    %815 = vmatprep.subr.mxu0 0.0
    %816 = vmatpush1.msra.mxu0 0.0
    %817 = vmatprep.subr.mxu0 0.0
    %818 = vmatpush1.msra.mxu0 0.0
    %819 = vmatprep.mubr.f32.mxu0 0.0
    %v820 = vand.u32 %v81, 4294901760
    %821 = vmatmul.mubr.f32.gmra.mrb[0].mxu0 %v820
    %v822 = vpop.f32.mrb[0].mxu0
    %v823 = vadd.f32 %v708, %v822
    %v824 = vpop.f32.mrb[0].mxu0
    %825 = vmatprep.mubr.f32.mxu0 0.0
    %v826 = vand.u32 %v84, 4294901760
    %827 = vmatmul.mubr.f32.gmra.mrb[0].mxu0 %v826
    %v828 = vpop.f32.mrb[0].mxu0
    %v829 = vadd.f32 %v714, %v828
    %v830 = vpop.f32.mrb[0].mxu0
    %831 = vmatprep.mubr.f32.mxu0 0.0
    %v832 = vand.u32 %v87, 4294901760
    %833 = vmatmul.mubr.f32.gmra.mrb[0].mxu0 %v832
    %v834 = vpop.f32.mrb[0].mxu0
    %v835 = vadd.f32 %v720, %v834
    %v836 = vpop.f32.mrb[0].mxu0
    %837 = vmatprep.mubr.f32.mxu0 0.0
    %v838 = vand.u32 %v90, 4294901760
    %839 = vmatmul.mubr.f32.gmra.mrb[0].mxu0 %v838
    %v840 = vpop.f32.mrb[0].mxu0
    %v841 = vadd.f32 %v726, %v840
    %v842 = vpop.f32.mrb[0].mxu0
    %843 = vmatprep.mubr.f32.mxu0 0.0
    %v844 = vand.u32 %v93, 4294901760
    %845 = vmatmul.mubr.f32.gmra.mrb[0].mxu0 %v844
    %v846 = vpop.f32.mrb[0].mxu0
    %v847 = vadd.f32 %v732, %v846
    %v848 = vpop.f32.mrb[0].mxu0
    %849 = vmatprep.mubr.f32.mxu0 0.0
    %v850 = vand.u32 %v96, 4294901760
    %851 = vmatmul.mubr.f32.gmra.mrb[0].mxu0 %v850
    %v852 = vpop.f32.mrb[0].mxu0
    %v853 = vadd.f32 %v738, %v852
    %v854 = vpop.f32.mrb[0].mxu0
    %855 = vmatprep.mubr.f32.mxu0 0.0
    %v856 = vand.u32 %v99, 4294901760
    %857 = vmatmul.mubr.f32.gmra.mrb[0].mxu0 %v856
    %v858 = vpop.f32.mrb[0].mxu0
    %v859 = vadd.f32 %v744, %v858
    %v860 = vpop.f32.mrb[0].mxu0
    %861 = vmatprep.mubr.f32.mxu0 0.0
    %v862 = vand.u32 %v102, 4294901760
    %863 = vmatmul.mubr.f32.gmra.mrb[0].mxu0 %v862
    %v864 = vpop.f32.mrb[0].mxu0
    %v865 = vadd.f32 %v750, %v864
    %v866 = vpop.f32.mrb[0].mxu0
    %867 = vdwg.mxu0
    %v868 = vmax.f32 %v823, 0.0
    %v869 = vmax.f32 %v829, 0.0
    %v870 = vmax.f32 %v835, 0.0
    %v871 = vmax.f32 %v841, 0.0
    %v872 = vmax.f32 %v847, 0.0
    %v873 = vmax.f32 %v853, 0.0
    %v874 = vmax.f32 %v859, 0.0
    %v875 = vmax.f32 %v865, 0.0
    %v876 = vld [vmem:[%s3] sm:$0xff]
    %v877 = vld [vmem:[%s4] sm:$0xff]
    %879 = vset.pattern.permute.xlu0 0
    %880 = vperm.xlu0 %879, %v877
    %v881 = vpop.permute.xlu0 %880
    %vm883 = vcmask 523264
    %v885 = vsel %vm883, %v876, 0
    %887 = vmatprep.subr.mxu0 0.0
    %v888 = vand.u32 %v868, 4294901760
    %889 = vmatpush1.msra.mxu0 %v888
    %890 = vmatprep.subr.mxu0 0.0
    %v891 = vand.u32 %v869, 4294901760
    %892 = vmatpush1.msra.mxu0 %v891
    %893 = vmatprep.subr.mxu0 0.0
    %v894 = vand.u32 %v870, 4294901760
    %895 = vmatpush1.msra.mxu0 %v894
    %896 = vmatprep.subr.mxu0 0.0
    %v897 = vand.u32 %v871, 4294901760
    %898 = vmatpush1.msra.mxu0 %v897
    %899 = vmatprep.subr.mxu0 0.0
    %v900 = vand.u32 %v872, 4294901760
    %901 = vmatpush1.msra.mxu0 %v900
    %902 = vmatprep.subr.mxu0 0.0
    %v903 = vand.u32 %v873, 4294901760
    %904 = vmatpush1.msra.mxu0 %v903
    %905 = vmatprep.subr.mxu0 0.0
    %v906 = vand.u32 %v874, 4294901760
    %907 = vmatpush1.msra.mxu0 %v906
    %908 = vmatprep.subr.mxu0 0.0
    %v909 = vand.u32 %v875, 4294901760
    %910 = vmatpush1.msra.mxu0 %v909
    %911 = vmatprep.subr.mxu0 0.0
    %912 = vmatpush1.msra.mxu0 0.0
    %913 = vmatprep.subr.mxu0 0.0
    %914 = vmatpush1.msra.mxu0 0.0
    %915 = vmatprep.subr.mxu0 0.0
    %916 = vmatpush1.msra.mxu0 0.0
    %917 = vmatprep.subr.mxu0 0.0
    %918 = vmatpush1.msra.mxu0 0.0
    %919 = vmatprep.subr.mxu0 0.0
    %920 = vmatpush1.msra.mxu0 0.0
    %921 = vmatprep.subr.mxu0 0.0
    %922 = vmatpush1.msra.mxu0 0.0
    %923 = vmatprep.subr.mxu0 0.0
    %924 = vmatpush1.msra.mxu0 0.0
    %925 = vmatprep.subr.mxu0 0.0
    %926 = vmatpush1.msra.mxu0 0.0
    %927 = vmatprep.subr.mxu0 0.0
    %928 = vmatpush1.msra.mxu0 0.0
    %929 = vmatprep.subr.mxu0 0.0
    %930 = vmatpush1.msra.mxu0 0.0
    %931 = vmatprep.subr.mxu0 0.0
    %932 = vmatpush1.msra.mxu0 0.0
    %933 = vmatprep.subr.mxu0 0.0
    %934 = vmatpush1.msra.mxu0 0.0
    %935 = vmatprep.subr.mxu0 0.0
    %936 = vmatpush1.msra.mxu0 0.0
    %937 = vmatprep.subr.mxu0 0.0
    %938 = vmatpush1.msra.mxu0 0.0
    %939 = vmatprep.subr.mxu0 0.0
    %940 = vmatpush1.msra.mxu0 0.0
    %941 = vmatprep.subr.mxu0 0.0
    %942 = vmatpush1.msra.mxu0 0.0
    %943 = vmatprep.subr.mxu0 0.0
    %944 = vmatpush1.msra.mxu0 0.0
    %945 = vmatprep.subr.mxu0 0.0
    %946 = vmatpush1.msra.mxu0 0.0
    %947 = vmatprep.subr.mxu0 0.0
    %948 = vmatpush1.msra.mxu0 0.0
    %949 = vmatprep.subr.mxu0 0.0
    %950 = vmatpush1.msra.mxu0 0.0
    %951 = vmatprep.subr.mxu0 0.0
    %952 = vmatpush1.msra.mxu0 0.0
    %953 = vmatprep.subr.mxu0 0.0
    %954 = vmatpush1.msra.mxu0 0.0
    %955 = vmatprep.subr.mxu0 0.0
    %956 = vmatpush1.msra.mxu0 0.0
    %957 = vmatprep.subr.mxu0 0.0
    %958 = vmatpush1.msra.mxu0 0.0
    %959 = vmatprep.mubr.f32.mxu0 0.0
    %v960 = vand.u32 %v885, 4294901760
    %v961 = vsub.f32 %v885, %v960
    %v962 = vand.u32 %v961, 4294901760
    %v963 = vsub.f32 %v961, %v962
    %v964 = vand.u32 %v963, 4294901760
    %965 = vmatmul.mubr.f32.gmra.mrb[0].mxu0 %v964
    %v966 = vpop.f32.mrb[0].mxu0
    %v967 = vadd.f32 %v881, %v966
    %v968 = vpop.f32.mrb[0].mxu0
    %969 = vdwg.mxu0
    %970 = vmatprep.subr.mxu0 0.0
    %v971 = vand.u32 %v868, 4294901760
    %v972 = vsub.f32 %v868, %v971
    %v973 = vand.u32 %v972, 4294901760
    %v974 = vsub.f32 %v972, %v973
    %v975 = vand.u32 %v974, 4294901760
    %976 = vmatpush1.msra.mxu0 %v975
    %977 = vmatprep.subr.mxu0 0.0
    %v978 = vand.u32 %v869, 4294901760
    %v979 = vsub.f32 %v869, %v978
    %v980 = vand.u32 %v979, 4294901760
    %v981 = vsub.f32 %v979, %v980
    %v982 = vand.u32 %v981, 4294901760
    %983 = vmatpush1.msra.mxu0 %v982
    %984 = vmatprep.subr.mxu0 0.0
    %v985 = vand.u32 %v870, 4294901760
    %v986 = vsub.f32 %v870, %v985
    %v987 = vand.u32 %v986, 4294901760
    %v988 = vsub.f32 %v986, %v987
    %v989 = vand.u32 %v988, 4294901760
    %990 = vmatpush1.msra.mxu0 %v989
    %991 = vmatprep.subr.mxu0 0.0
    %v992 = vand.u32 %v871, 4294901760
    %v993 = vsub.f32 %v871, %v992
    %v994 = vand.u32 %v993, 4294901760
    %v995 = vsub.f32 %v993, %v994
    %v996 = vand.u32 %v995, 4294901760
    %997 = vmatpush1.msra.mxu0 %v996
    %998 = vmatprep.subr.mxu0 0.0
    %v999 = vand.u32 %v872, 4294901760
    %v1000 = vsub.f32 %v872, %v999
    %v1001 = vand.u32 %v1000, 4294901760
    %v1002 = vsub.f32 %v1000, %v1001
    %v1003 = vand.u32 %v1002, 4294901760
    %1004 = vmatpush1.msra.mxu0 %v1003
    %1005 = vmatprep.subr.mxu0 0.0
    %v1006 = vand.u32 %v873, 4294901760
    %v1007 = vsub.f32 %v873, %v1006
    %v1008 = vand.u32 %v1007, 4294901760
    %v1009 = vsub.f32 %v1007, %v1008
    %v1010 = vand.u32 %v1009, 4294901760
    %1011 = vmatpush1.msra.mxu0 %v1010
    %1012 = vmatprep.subr.mxu0 0.0
    %v1013 = vand.u32 %v874, 4294901760
    %v1014 = vsub.f32 %v874, %v1013
    %v1015 = vand.u32 %v1014, 4294901760
    %v1016 = vsub.f32 %v1014, %v1015
    %v1017 = vand.u32 %v1016, 4294901760
    %1018 = vmatpush1.msra.mxu0 %v1017
    %1019 = vmatprep.subr.mxu0 0.0
    %v1020 = vand.u32 %v875, 4294901760
    %v1021 = vsub.f32 %v875, %v1020
    %v1022 = vand.u32 %v1021, 4294901760
    %v1023 = vsub.f32 %v1021, %v1022
    %v1024 = vand.u32 %v1023, 4294901760
    %1025 = vmatpush1.msra.mxu0 %v1024
    %1026 = vmatprep.subr.mxu0 0.0
    %1027 = vmatpush1.msra.mxu0 0.0
    %1028 = vmatprep.subr.mxu0 0.0
    %1029 = vmatpush1.msra.mxu0 0.0
    %1030 = vmatprep.subr.mxu0 0.0
    %1031 = vmatpush1.msra.mxu0 0.0
    %1032 = vmatprep.subr.mxu0 0.0
    %1033 = vmatpush1.msra.mxu0 0.0
    %1034 = vmatprep.subr.mxu0 0.0
    %1035 = vmatpush1.msra.mxu0 0.0
    %1036 = vmatprep.subr.mxu0 0.0
    %1037 = vmatpush1.msra.mxu0 0.0
    %1038 = vmatprep.subr.mxu0 0.0
    %1039 = vmatpush1.msra.mxu0 0.0
    %1040 = vmatprep.subr.mxu0 0.0
    %1041 = vmatpush1.msra.mxu0 0.0
    %1042 = vmatprep.subr.mxu0 0.0
    %1043 = vmatpush1.msra.mxu0 0.0
    %1044 = vmatprep.subr.mxu0 0.0
    %1045 = vmatpush1.msra.mxu0 0.0
    %1046 = vmatprep.subr.mxu0 0.0
    %1047 = vmatpush1.msra.mxu0 0.0
    %1048 = vmatprep.subr.mxu0 0.0
    %1049 = vmatpush1.msra.mxu0 0.0
    %1050 = vmatprep.subr.mxu0 0.0
    %1051 = vmatpush1.msra.mxu0 0.0
    %1052 = vmatprep.subr.mxu0 0.0
    %1053 = vmatpush1.msra.mxu0 0.0
    %1054 = vmatprep.subr.mxu0 0.0
    %1055 = vmatpush1.msra.mxu0 0.0
    %1056 = vmatprep.subr.mxu0 0.0
    %1057 = vmatpush1.msra.mxu0 0.0
    %1058 = vmatprep.subr.mxu0 0.0
    %1059 = vmatpush1.msra.mxu0 0.0
    %1060 = vmatprep.subr.mxu0 0.0
    %1061 = vmatpush1.msra.mxu0 0.0
    %1062 = vmatprep.subr.mxu0 0.0
    %1063 = vmatpush1.msra.mxu0 0.0
    %1064 = vmatprep.subr.mxu0 0.0
    %1065 = vmatpush1.msra.mxu0 0.0
    %1066 = vmatprep.subr.mxu0 0.0
    %1067 = vmatpush1.msra.mxu0 0.0
    %1068 = vmatprep.subr.mxu0 0.0
    %1069 = vmatpush1.msra.mxu0 0.0
    %1070 = vmatprep.subr.mxu0 0.0
    %1071 = vmatpush1.msra.mxu0 0.0
    %1072 = vmatprep.subr.mxu0 0.0
    %1073 = vmatpush1.msra.mxu0 0.0
    %1074 = vmatprep.mubr.f32.mxu0 0.0
    %v1075 = vand.u32 %v885, 4294901760
    %1076 = vmatmul.mubr.f32.gmra.mrb[0].mxu0 %v1075
    %v1077 = vpop.f32.mrb[0].mxu0
    %v1078 = vadd.f32 %v967, %v1077
    %v1079 = vpop.f32.mrb[0].mxu0
    %1080 = vdwg.mxu0
    %1081 = vmatprep.subr.mxu0 0.0
    %v1082 = vand.u32 %v868, 4294901760
    %v1083 = vsub.f32 %v868, %v1082
    %1084 = vmatpush1.msra.mxu0 %v1083
    %1085 = vmatprep.subr.mxu0 0.0
    %v1086 = vand.u32 %v869, 4294901760
    %v1087 = vsub.f32 %v869, %v1086
    %1088 = vmatpush1.msra.mxu0 %v1087
    %1089 = vmatprep.subr.mxu0 0.0
    %v1090 = vand.u32 %v870, 4294901760
    %v1091 = vsub.f32 %v870, %v1090
    %1092 = vmatpush1.msra.mxu0 %v1091
    %1093 = vmatprep.subr.mxu0 0.0
    %v1094 = vand.u32 %v871, 4294901760
    %v1095 = vsub.f32 %v871, %v1094
    %1096 = vmatpush1.msra.mxu0 %v1095
    %1097 = vmatprep.subr.mxu0 0.0
    %v1098 = vand.u32 %v872, 4294901760
    %v1099 = vsub.f32 %v872, %v1098
    %1100 = vmatpush1.msra.mxu0 %v1099
    %1101 = vmatprep.subr.mxu0 0.0
    %v1102 = vand.u32 %v873, 4294901760
    %v1103 = vsub.f32 %v873, %v1102
    %1104 = vmatpush1.msra.mxu0 %v1103
    %1105 = vmatprep.subr.mxu0 0.0
    %v1106 = vand.u32 %v874, 4294901760
    %v1107 = vsub.f32 %v874, %v1106
    %1108 = vmatpush1.msra.mxu0 %v1107
    %1109 = vmatprep.subr.mxu0 0.0
    %v1110 = vand.u32 %v875, 4294901760
    %v1111 = vsub.f32 %v875, %v1110
    %1112 = vmatpush1.msra.mxu0 %v1111
    %1113 = vmatprep.subr.mxu0 0.0
    %1114 = vmatpush1.msra.mxu0 0.0
    %1115 = vmatprep.subr.mxu0 0.0
    %1116 = vmatpush1.msra.mxu0 0.0
    %1117 = vmatprep.subr.mxu0 0.0
    %1118 = vmatpush1.msra.mxu0 0.0
    %1119 = vmatprep.subr.mxu0 0.0
    %1120 = vmatpush1.msra.mxu0 0.0
    %1121 = vmatprep.subr.mxu0 0.0
    %1122 = vmatpush1.msra.mxu0 0.0
    %1123 = vmatprep.subr.mxu0 0.0
    %1124 = vmatpush1.msra.mxu0 0.0
    %1125 = vmatprep.subr.mxu0 0.0
    %1126 = vmatpush1.msra.mxu0 0.0
    %1127 = vmatprep.subr.mxu0 0.0
    %1128 = vmatpush1.msra.mxu0 0.0
    %1129 = vmatprep.subr.mxu0 0.0
    %1130 = vmatpush1.msra.mxu0 0.0
    %1131 = vmatprep.subr.mxu0 0.0
    %1132 = vmatpush1.msra.mxu0 0.0
    %1133 = vmatprep.subr.mxu0 0.0
    %1134 = vmatpush1.msra.mxu0 0.0
    %1135 = vmatprep.subr.mxu0 0.0
    %1136 = vmatpush1.msra.mxu0 0.0
    %1137 = vmatprep.subr.mxu0 0.0
    %1138 = vmatpush1.msra.mxu0 0.0
    %1139 = vmatprep.subr.mxu0 0.0
    %1140 = vmatpush1.msra.mxu0 0.0
    %1141 = vmatprep.subr.mxu0 0.0
    %1142 = vmatpush1.msra.mxu0 0.0
    %1143 = vmatprep.subr.mxu0 0.0
    %1144 = vmatpush1.msra.mxu0 0.0
    %1145 = vmatprep.subr.mxu0 0.0
    %1146 = vmatpush1.msra.mxu0 0.0
    %1147 = vmatprep.subr.mxu0 0.0
    %1148 = vmatpush1.msra.mxu0 0.0
    %1149 = vmatprep.subr.mxu0 0.0
    %1150 = vmatpush1.msra.mxu0 0.0
    %1151 = vmatprep.subr.mxu0 0.0
    %1152 = vmatpush1.msra.mxu0 0.0
    %1153 = vmatprep.subr.mxu0 0.0
    %1154 = vmatpush1.msra.mxu0 0.0
    %1155 = vmatprep.subr.mxu0 0.0
    %1156 = vmatpush1.msra.mxu0 0.0
    %1157 = vmatprep.subr.mxu0 0.0
    %1158 = vmatpush1.msra.mxu0 0.0
    %1159 = vmatprep.subr.mxu0 0.0
    %1160 = vmatpush1.msra.mxu0 0.0
    %1161 = vmatprep.mubr.f32.mxu0 0.0
    %v1162 = vand.u32 %v885, 4294901760
    %v1163 = vsub.f32 %v885, %v1162
    %1164 = vmatmul.mubr.f32.gmra.mrb[0].mxu0 %v1163
    %v1165 = vpop.f32.mrb[0].mxu0
    %v1166 = vadd.f32 %v1078, %v1165
    %v1167 = vpop.f32.mrb[0].mxu0
    %1168 = vdwg.mxu0
    %1169 = vmatprep.subr.mxu0 0.0
    %v1170 = vand.u32 %v868, 4294901760
    %1171 = vmatpush1.msra.mxu0 %v1170
    %1172 = vmatprep.subr.mxu0 0.0
    %v1173 = vand.u32 %v869, 4294901760
    %1174 = vmatpush1.msra.mxu0 %v1173
    %1175 = vmatprep.subr.mxu0 0.0
    %v1176 = vand.u32 %v870, 4294901760
    %1177 = vmatpush1.msra.mxu0 %v1176
    %1178 = vmatprep.subr.mxu0 0.0
    %v1179 = vand.u32 %v871, 4294901760
    %1180 = vmatpush1.msra.mxu0 %v1179
    %1181 = vmatprep.subr.mxu0 0.0
    %v1182 = vand.u32 %v872, 4294901760
    %1183 = vmatpush1.msra.mxu0 %v1182
    %1184 = vmatprep.subr.mxu0 0.0
    %v1185 = vand.u32 %v873, 4294901760
    %1186 = vmatpush1.msra.mxu0 %v1185
    %1187 = vmatprep.subr.mxu0 0.0
    %v1188 = vand.u32 %v874, 4294901760
    %1189 = vmatpush1.msra.mxu0 %v1188
    %1190 = vmatprep.subr.mxu0 0.0
    %v1191 = vand.u32 %v875, 4294901760
    %1192 = vmatpush1.msra.mxu0 %v1191
    %1193 = vmatprep.subr.mxu0 0.0
    %1194 = vmatpush1.msra.mxu0 0.0
    %1195 = vmatprep.subr.mxu0 0.0
    %1196 = vmatpush1.msra.mxu0 0.0
    %1197 = vmatprep.subr.mxu0 0.0
    %1198 = vmatpush1.msra.mxu0 0.0
    %1199 = vmatprep.subr.mxu0 0.0
    %1200 = vmatpush1.msra.mxu0 0.0
    %1201 = vmatprep.subr.mxu0 0.0
    %1202 = vmatpush1.msra.mxu0 0.0
    %1203 = vmatprep.subr.mxu0 0.0
    %1204 = vmatpush1.msra.mxu0 0.0
    %1205 = vmatprep.subr.mxu0 0.0
    %1206 = vmatpush1.msra.mxu0 0.0
    %1207 = vmatprep.subr.mxu0 0.0
    %1208 = vmatpush1.msra.mxu0 0.0
    %1209 = vmatprep.subr.mxu0 0.0
    %1210 = vmatpush1.msra.mxu0 0.0
    %1211 = vmatprep.subr.mxu0 0.0
    %1212 = vmatpush1.msra.mxu0 0.0
    %1213 = vmatprep.subr.mxu0 0.0
    %1214 = vmatpush1.msra.mxu0 0.0
    %1215 = vmatprep.subr.mxu0 0.0
    %1216 = vmatpush1.msra.mxu0 0.0
    %1217 = vmatprep.subr.mxu0 0.0
    %1218 = vmatpush1.msra.mxu0 0.0
    %1219 = vmatprep.subr.mxu0 0.0
    %1220 = vmatpush1.msra.mxu0 0.0
    %1221 = vmatprep.subr.mxu0 0.0
    %1222 = vmatpush1.msra.mxu0 0.0
    %1223 = vmatprep.subr.mxu0 0.0
    %1224 = vmatpush1.msra.mxu0 0.0
    %1225 = vmatprep.subr.mxu0 0.0
    %1226 = vmatpush1.msra.mxu0 0.0
    %1227 = vmatprep.subr.mxu0 0.0
    %1228 = vmatpush1.msra.mxu0 0.0
    %1229 = vmatprep.subr.mxu0 0.0
    %1230 = vmatpush1.msra.mxu0 0.0
    %1231 = vmatprep.subr.mxu0 0.0
    %1232 = vmatpush1.msra.mxu0 0.0
    %1233 = vmatprep.subr.mxu0 0.0
    %1234 = vmatpush1.msra.mxu0 0.0
    %1235 = vmatprep.subr.mxu0 0.0
    %1236 = vmatpush1.msra.mxu0 0.0
    %1237 = vmatprep.subr.mxu0 0.0
    %1238 = vmatpush1.msra.mxu0 0.0
    %1239 = vmatprep.subr.mxu0 0.0
    %1240 = vmatpush1.msra.mxu0 0.0
    %1241 = vmatprep.mubr.f32.mxu0 0.0
    %v1242 = vand.u32 %v885, 4294901760
    %v1243 = vsub.f32 %v885, %v1242
    %v1244 = vand.u32 %v1243, 4294901760
    %1245 = vmatmul.mubr.f32.gmra.mrb[0].mxu0 %v1244
    %v1246 = vpop.f32.mrb[0].mxu0
    %v1247 = vadd.f32 %v1166, %v1246
    %v1248 = vpop.f32.mrb[0].mxu0
    %1249 = vdwg.mxu0
    %1250 = vmatprep.subr.mxu0 0.0
    %v1251 = vand.u32 %v868, 4294901760
    %v1252 = vsub.f32 %v868, %v1251
    %v1253 = vand.u32 %v1252, 4294901760
    %1254 = vmatpush1.msra.mxu0 %v1253
    %1255 = vmatprep.subr.mxu0 0.0
    %v1256 = vand.u32 %v869, 4294901760
    %v1257 = vsub.f32 %v869, %v1256
    %v1258 = vand.u32 %v1257, 4294901760
    %1259 = vmatpush1.msra.mxu0 %v1258
    %1260 = vmatprep.subr.mxu0 0.0
    %v1261 = vand.u32 %v870, 4294901760
    %v1262 = vsub.f32 %v870, %v1261
    %v1263 = vand.u32 %v1262, 4294901760
    %1264 = vmatpush1.msra.mxu0 %v1263
    %1265 = vmatprep.subr.mxu0 0.0
    %v1266 = vand.u32 %v871, 4294901760
    %v1267 = vsub.f32 %v871, %v1266
    %v1268 = vand.u32 %v1267, 4294901760
    %1269 = vmatpush1.msra.mxu0 %v1268
    %1270 = vmatprep.subr.mxu0 0.0
    %v1271 = vand.u32 %v872, 4294901760
    %v1272 = vsub.f32 %v872, %v1271
    %v1273 = vand.u32 %v1272, 4294901760
    %1274 = vmatpush1.msra.mxu0 %v1273
    %1275 = vmatprep.subr.mxu0 0.0
    %v1276 = vand.u32 %v873, 4294901760
    %v1277 = vsub.f32 %v873, %v1276
    %v1278 = vand.u32 %v1277, 4294901760
    %1279 = vmatpush1.msra.mxu0 %v1278
    %1280 = vmatprep.subr.mxu0 0.0
    %v1281 = vand.u32 %v874, 4294901760
    %v1282 = vsub.f32 %v874, %v1281
    %v1283 = vand.u32 %v1282, 4294901760
    %1284 = vmatpush1.msra.mxu0 %v1283
    %1285 = vmatprep.subr.mxu0 0.0
    %v1286 = vand.u32 %v875, 4294901760
    %v1287 = vsub.f32 %v875, %v1286
    %v1288 = vand.u32 %v1287, 4294901760
    %1289 = vmatpush1.msra.mxu0 %v1288
    %1290 = vmatprep.subr.mxu0 0.0
    %1291 = vmatpush1.msra.mxu0 0.0
    %1292 = vmatprep.subr.mxu0 0.0
    %1293 = vmatpush1.msra.mxu0 0.0
    %1294 = vmatprep.subr.mxu0 0.0
    %1295 = vmatpush1.msra.mxu0 0.0
    %1296 = vmatprep.subr.mxu0 0.0
    %1297 = vmatpush1.msra.mxu0 0.0
    %1298 = vmatprep.subr.mxu0 0.0
    %1299 = vmatpush1.msra.mxu0 0.0
    %1300 = vmatprep.subr.mxu0 0.0
    %1301 = vmatpush1.msra.mxu0 0.0
    %1302 = vmatprep.subr.mxu0 0.0
    %1303 = vmatpush1.msra.mxu0 0.0
    %1304 = vmatprep.subr.mxu0 0.0
    %1305 = vmatpush1.msra.mxu0 0.0
    %1306 = vmatprep.subr.mxu0 0.0
    %1307 = vmatpush1.msra.mxu0 0.0
    %1308 = vmatprep.subr.mxu0 0.0
    %1309 = vmatpush1.msra.mxu0 0.0
    %1310 = vmatprep.subr.mxu0 0.0
    %1311 = vmatpush1.msra.mxu0 0.0
    %1312 = vmatprep.subr.mxu0 0.0
    %1313 = vmatpush1.msra.mxu0 0.0
    %1314 = vmatprep.subr.mxu0 0.0
    %1315 = vmatpush1.msra.mxu0 0.0
    %1316 = vmatprep.subr.mxu0 0.0
    %1317 = vmatpush1.msra.mxu0 0.0
    %1318 = vmatprep.subr.mxu0 0.0
    %1319 = vmatpush1.msra.mxu0 0.0
    %1320 = vmatprep.subr.mxu0 0.0
    %1321 = vmatpush1.msra.mxu0 0.0
    %1322 = vmatprep.subr.mxu0 0.0
    %1323 = vmatpush1.msra.mxu0 0.0
    %1324 = vmatprep.subr.mxu0 0.0
    %1325 = vmatpush1.msra.mxu0 0.0
    %1326 = vmatprep.subr.mxu0 0.0
    %1327 = vmatpush1.msra.mxu0 0.0
    %1328 = vmatprep.subr.mxu0 0.0
    %1329 = vmatpush1.msra.mxu0 0.0
    %1330 = vmatprep.subr.mxu0 0.0
    %1331 = vmatpush1.msra.mxu0 0.0
    %1332 = vmatprep.subr.mxu0 0.0
    %1333 = vmatpush1.msra.mxu0 0.0
    %1334 = vmatprep.subr.mxu0 0.0
    %1335 = vmatpush1.msra.mxu0 0.0
    %1336 = vmatprep.subr.mxu0 0.0
    %1337 = vmatpush1.msra.mxu0 0.0
    %1338 = vmatprep.mubr.f32.mxu0 0.0
    %v1339 = vand.u32 %v885, 4294901760
    %1340 = vmatmul.mubr.f32.gmra.mrb[0].mxu0 %v1339
    %v1341 = vpop.f32.mrb[0].mxu0
    %v1342 = vadd.f32 %v1247, %v1341
    %v1343 = vpop.f32.mrb[0].mxu0
    %1344 = vdwg.mxu0
    %1345 = vmatprep.subr.mxu0 0.0
    %v1346 = vand.u32 %v868, 4294901760
    %1347 = vmatpush1.msra.mxu0 %v1346
    %1348 = vmatprep.subr.mxu0 0.0
    %v1349 = vand.u32 %v869, 4294901760
    %1350 = vmatpush1.msra.mxu0 %v1349
    %1351 = vmatprep.subr.mxu0 0.0
    %v1352 = vand.u32 %v870, 4294901760
    %1353 = vmatpush1.msra.mxu0 %v1352
    %1354 = vmatprep.subr.mxu0 0.0
    %v1355 = vand.u32 %v871, 4294901760
    %1356 = vmatpush1.msra.mxu0 %v1355
    %1357 = vmatprep.subr.mxu0 0.0
    %v1358 = vand.u32 %v872, 4294901760
    %1359 = vmatpush1.msra.mxu0 %v1358
    %1360 = vmatprep.subr.mxu0 0.0
    %v1361 = vand.u32 %v873, 4294901760
    %1362 = vmatpush1.msra.mxu0 %v1361
    %1363 = vmatprep.subr.mxu0 0.0
    %v1364 = vand.u32 %v874, 4294901760
    %1365 = vmatpush1.msra.mxu0 %v1364
    %1366 = vmatprep.subr.mxu0 0.0
    %v1367 = vand.u32 %v875, 4294901760
    %1368 = vmatpush1.msra.mxu0 %v1367
    %1369 = vmatprep.subr.mxu0 0.0
    %1370 = vmatpush1.msra.mxu0 0.0
    %1371 = vmatprep.subr.mxu0 0.0
    %1372 = vmatpush1.msra.mxu0 0.0
    %1373 = vmatprep.subr.mxu0 0.0
    %1374 = vmatpush1.msra.mxu0 0.0
    %1375 = vmatprep.subr.mxu0 0.0
    %1376 = vmatpush1.msra.mxu0 0.0
    %1377 = vmatprep.subr.mxu0 0.0
    %1378 = vmatpush1.msra.mxu0 0.0
    %1379 = vmatprep.subr.mxu0 0.0
    %1380 = vmatpush1.msra.mxu0 0.0
    %1381 = vmatprep.subr.mxu0 0.0
    %1382 = vmatpush1.msra.mxu0 0.0
    %1383 = vmatprep.subr.mxu0 0.0
    %1384 = vmatpush1.msra.mxu0 0.0
    %1385 = vmatprep.subr.mxu0 0.0
    %1386 = vmatpush1.msra.mxu0 0.0
    %1387 = vmatprep.subr.mxu0 0.0
    %1388 = vmatpush1.msra.mxu0 0.0
    %1389 = vmatprep.subr.mxu0 0.0
    %1390 = vmatpush1.msra.mxu0 0.0
    %1391 = vmatprep.subr.mxu0 0.0
    %1392 = vmatpush1.msra.mxu0 0.0
    %1393 = vmatprep.subr.mxu0 0.0
    %1394 = vmatpush1.msra.mxu0 0.0
    %1395 = vmatprep.subr.mxu0 0.0
    %1396 = vmatpush1.msra.mxu0 0.0
    %1397 = vmatprep.subr.mxu0 0.0
    %1398 = vmatpush1.msra.mxu0 0.0
    %1399 = vmatprep.subr.mxu0 0.0
    %1400 = vmatpush1.msra.mxu0 0.0
    %1401 = vmatprep.subr.mxu0 0.0
    %1402 = vmatpush1.msra.mxu0 0.0
    %1403 = vmatprep.subr.mxu0 0.0
    %1404 = vmatpush1.msra.mxu0 0.0
    %1405 = vmatprep.subr.mxu0 0.0
    %1406 = vmatpush1.msra.mxu0 0.0
    %1407 = vmatprep.subr.mxu0 0.0
    %1408 = vmatpush1.msra.mxu0 0.0
    %1409 = vmatprep.subr.mxu0 0.0
    %1410 = vmatpush1.msra.mxu0 0.0
    %1411 = vmatprep.subr.mxu0 0.0
    %1412 = vmatpush1.msra.mxu0 0.0
    %1413 = vmatprep.subr.mxu0 0.0
    %1414 = vmatpush1.msra.mxu0 0.0
    %1415 = vmatprep.subr.mxu0 0.0
    %1416 = vmatpush1.msra.mxu0 0.0
    %1417 = vmatprep.mubr.f32.mxu0 0.0
    %v1418 = vand.u32 %v885, 4294901760
    %1419 = vmatmul.mubr.f32.gmra.mrb[0].mxu0 %v1418
    %v1420 = vpop.f32.mrb[0].mxu0
    %v1421 = vadd.f32 %v1342, %v1420
    %v1422 = vpop.f32.mrb[0].mxu0
    %1423 = vdwg.mxu0
    %1424 = vst [vmem:[#allocation2] sm:$0xff] %v1421
    // Predicated region
    $region22: #{tpu_custom_call.1} parent=1 // pred_check
      _
    $region23: #{tpu_custom_call.1} parent=1 // pred_check_branch
      %1426 = sbr.rel (0) target = $region25
    $region24: #{tpu_custom_call.1} parent=1 // pred_region
      %s1428 = ssub.s32 128, 128
      %1429 = vsyncadd [#allocation3], %s1428
      %s1431 = sshll.u32 [#allocation2], 4
      %s1432 = int_to_ptr.vmem [resolvable:$true] %s1431
      %1434 = dma.vmem_to_hbm [thread:$0]  %s1432, 128, %s5, [#allocation3]
    $region25: #{tpu_custom_call.1} parent=1 // pred_fallthru
      _
    // Predicated region
    $region26: #{tpu_custom_call.1} parent=1 // pred_check
      _
    $region27: #{tpu_custom_call.1} parent=1 // pred_check_branch
      %1436 = sbr.rel (0) target = $region29
    $region28: #{tpu_custom_call.1} parent=1 // pred_region
      %1437 = dma.done [#allocation3], 128
    $region29: #{tpu_custom_call.1} parent=1 // pred_fallthru
      _
    %1438 = vsyncpa [#allocation3], 1

</llo_original>
